<compile_context>
chip_gen: v7x
topology: tpu7x:2x2x1
jax: 0.10.0
libtpu: 0.0.40
codegen_flags: <defaults>
</compile_context>

<pallas_src>
import jax
import jax.numpy as jnp
from jax.experimental import pallas as pl
from jax.experimental.pallas import tpu as pltpu

# ----- module-consistent config --------------------------------------------
N_AGENTS = 2
BS = 4                       # episodes; rows per step = BS * N_AGENTS
B = BS * N_AGENTS            # 8
T = 8                        # rollout length (time loop internalized)
INPUT_SHAPE = 10             # obs features (last N_AGENTS entries = agent one-hot)
HIDDEN = 32                  # rnn_hidden_dim
LATENT = 8                   # latent_dim
N_ACTIONS = 6
LANE = 128

F32 = jnp.float32


# ----- Pallas kernel: one GRU step per grid iteration -----------------------
def gru_step_kernel(gx_ref, w_ref, c_ref, out_ref, h_ref):
    """gx_ref : (1, B, 3*LANE) precomputed x_t@Wih + biases, gates in 128-lane
                blocks [r | z | n], pad lanes zero.  Streamed over T.
       w_ref  : (LANE, 5*LANE) [ Whh_pad (3*LANE) | W2_pad (LANE) | R_place (LANE) ]
       c_ref  : (B, 6*LANE)    [ h0_pad | qmask | qbias | bhh_n_pad (3*LANE) ]
       out_ref: (1, B, LANE)   lanes 0:32 = h_t, 32:38 = q_t, rest exact zeros.
       h_ref  : (B, LANE)      VMEM scratch carrying h (pad lanes stay exactly 0).
    """
    t = pl.program_id(0)

    @pl.when(t == 0)
    def _():
        h_ref[...] = c_ref[:, 0:LANE]            # zero-padded initial hidden state

    h = h_ref[...]                               # (B, 128)
    gx = gx_ref[0]                               # (B, 384)

    # The only matmul on the serial recurrent chain: h @ Whh (+ b_hh_n in n block).
    gh = jnp.dot(h, w_ref[:, 0:3 * LANE],
                 preferred_element_type=F32) + c_ref[:, 3 * LANE:6 * LANE]

    r = jax.nn.sigmoid(gx[:, 0:LANE] + gh[:, 0:LANE])
    z = jax.nn.sigmoid(gx[:, LANE:2 * LANE] + gh[:, LANE:2 * LANE])
    n = jnp.tanh(gx[:, 2 * LANE:3 * LANE] + r * gh[:, 2 * LANE:3 * LANE])
    h_new = (1.0 - z) * n + z * h                # pad lanes provably stay 0
    h_ref[...] = h_new

    # Hyper-net fc2: all-agent q in lanes 0:NA*A, per-row agent mask select,
    # then a tiny placement matmul summing agent blocks into lanes 32:38.
    qall = jnp.dot(h_new, w_ref[:, 3 * LANE:4 * LANE], preferred_element_type=F32)
    qsel = qall * c_ref[:, LANE:2 * LANE]
    qpl = jnp.dot(qsel, w_ref[:, 4 * LANE:5 * LANE], preferred_element_type=F32)

    # Single full-width unmasked store: [h | q | zeros].
    out_ref[0] = h_new + qpl + c_ref[:, 2 * LANE:3 * LANE]


# ----- host-side packing (call once per parameter update) -------------------
def pack_weights(params, latent_param):
    H, A, NA = HIDDEN, N_ACTIONS, N_AGENTS
    wih, bih = params["wih"].astype(F32), params["bih"].astype(F32)
    whh, bhh = params["whh"].astype(F32), params["bhh"].astype(F32)

    wih_pad = jnp.zeros((H, 3 * LANE), F32)
    whh_pad = jnp.zeros((LANE, 3 * LANE), F32)
    for g in range(3):
        wih_pad = wih_pad.at[:, g * LANE:g * LANE + H].set(wih[:, g * H:(g + 1) * H])
        whh_pad = whh_pad.at[:H, g * LANE:g * LANE + H].set(whh[:, g * H:(g + 1) * H])

    # b_ih + b_hh for r/z fold into the hoisted gx; b_hh_n must stay inside the
    # r-multiply so it is added after the in-kernel h@Whh matmul.
    gxb_pad = jnp.zeros((1, 3 * LANE), F32)
    gxb_pad = gxb_pad.at[:, 0:H].set(bih[:, 0:H] + bhh[:, 0:H])
    gxb_pad = gxb_pad.at[:, LANE:LANE + H].set(bih[:, H:2 * H] + bhh[:, H:2 * H])
    gxb_pad = gxb_pad.at[:, 2 * LANE:2 * LANE + H].set(bih[:, 2 * H:3 * H])
    bhh_pad = jnp.zeros((1, 3 * LANE), F32)
    bhh_pad = bhh_pad.at[:, 2 * LANE:2 * LANE + H].set(bhh[:, 2 * H:3 * H])

    # Hyper-nets collapse to the N_AGENTS distinct fc2 matrices (self.latent tiled).
    lat = latent_param.astype(F32)
    w2 = (lat @ params["wf2w"].astype(F32)).reshape(NA, H, A)
    b2 = (lat @ params["wf2b"].astype(F32)).reshape(NA, A)
    w2_pad = jnp.zeros((LANE, LANE), F32)
    for a in range(NA):
        w2_pad = w2_pad.at[:H, a * A:(a + 1) * A].set(w2[a])
    r_place = jnp.zeros((LANE, LANE), F32)
    for a in range(NA):
        r_place = r_place.at[a * A:(a + 1) * A, H:H + A].set(jnp.eye(A, dtype=F32))

    w_slab = jnp.concatenate([whh_pad, w2_pad, r_place], axis=1)   # (128, 640)
    return {"wfc1": params["wfc1"].astype(F32), "bfc1": params["bfc1"].astype(F32),
            "wih_pad": wih_pad, "gxb_pad": gxb_pad, "bhh_pad": bhh_pad,
            "w_slab": w_slab, "b2": b2}


def pack_row_constants(packed, batch_rows):
    """Per-row constants: agent one-hot mask, per-row fc2 bias, broadcast b_hh_n."""
    H, A, NA = HIDDEN, N_ACTIONS, N_AGENTS
    agent_of_row = jnp.arange(batch_rows) % NA       # row r -> agent r % n_agents
    col = jnp.arange(LANE)
    qmask = jnp.where((col[None, :] < NA * A) &
                      ((col[None, :] // A) == agent_of_row[:, None]),
                      1.0, 0.0).astype(F32)                          # (B, 128)
    qbias = jnp.zeros((batch_rows, LANE), F32)
    qbias = qbias.at[:, H:H + A].set(packed["b2"][agent_of_row])     # (B, 128)
    bhh_b = jnp.broadcast_to(packed["bhh_pad"], (batch_rows, 3 * LANE))
    return jnp.concatenate([qmask, qbias, bhh_b], axis=1)            # (B, 640)


# ----- rollout wrapper (jitted) ---------------------------------------------
def rollout(inputs_seq, hidden_state, packed, row_consts):
    """T recurrent forward() steps in ONE pallas_call (h carried in VMEM scratch)."""
    Tn = inputs_seq.shape[0]
    inp = inputs_seq.reshape(Tn, -1, INPUT_SHAPE).astype(F32)
    b = inp.shape[1]
    h0 = hidden_state.reshape(b, HIDDEN).astype(F32)

    # fc1 + input-side GRU projection hoisted out of the recurrence
    # (two batched matmuls over all T*B rows, off the serial chain).
    x = jnp.maximum(inp.reshape(Tn * b, INPUT_SHAPE) @ packed["wfc1"]
                    + packed["bfc1"], 0.0)
    gx = (x @ packed["wih_pad"] + packed["gxb_pad"]).reshape(Tn, b, 3 * LANE)

    h0_pad = jnp.zeros((b, LANE), F32).at[:, :HIDDEN].set(h0)
    c_slab = jnp.concatenate([h0_pad, row_consts], axis=1)           # (B, 768)

    out = pl.pallas_call(
        gru_step_kernel,
        out_shape=jax.ShapeDtypeStruct((Tn, b, LANE), F32),
        grid_spec=pltpu.PrefetchScalarGridSpec(
            num_scalar_prefetch=0,
            grid=(Tn,),
            in_specs=[
                pl.BlockSpec((1, b, 3 * LANE), lambda t: (t, 0, 0)),  # streamed gx
                pl.BlockSpec((LANE, 5 * LANE), lambda t: (0, 0)),     # weight slab
                pl.BlockSpec((b, 6 * LANE), lambda t: (0, 0)),        # per-row consts
            ],
            out_specs=pl.BlockSpec((1, b, LANE), lambda t: (t, 0, 0)),
            scratch_shapes=[pltpu.VMEM((b, LANE), F32)],
        ),
        compiler_params=pltpu.CompilerParams(
            dimension_semantics=("arbitrary",),       # h carried step-to-step
            vmem_limit_bytes=8 * 1024 * 1024,
        ),
    )(gx, packed["w_slab"], c_slab)

    q_seq = out[:, :, HIDDEN:HIDDEN + N_ACTIONS]
    h_seq = out[:, :, :HIDDEN]
    loss = jnp.float32(0.0)   # dead D.Normal/KL branch: loss is constant 0 in forward()
    return q_seq, h_seq, loss


rollout_jit = jax.jit(rollout)


# ----- pure-JAX reference: the PyTorch forward() applied T times ------------
def ref_rollout(inputs_seq, hidden_state, latent_param, params):
    Tn = inputs_seq.shape[0]
    inp = inputs_seq.reshape(Tn, -1, INPUT_SHAPE).astype(F32)
    b = inp.shape[1]
    lat = jnp.tile(latent_param, (b // N_AGENTS, 1)).astype(F32)
    fc2_w = (lat @ params["wf2w"]).reshape(b, HIDDEN, N_ACTIONS)
    fc2_b = (lat @ params["wf2b"]).reshape(b, N_ACTIONS)
    h = hidden_state.reshape(b, HIDDEN).astype(F32)
    H = HIDDEN
    qs, hs = [], []
    for t in range(Tn):
        x = jnp.maximum(inp[t] @ params["wfc1"] + params["bfc1"], 0.0)
        gx = x @ params["wih"] + params["bih"]
        gh = h @ params["whh"] + params["bhh"]
        r = jax.nn.sigmoid(gx[:, :H] + gh[:, :H])
        z = jax.nn.sigmoid(gx[:, H:2 * H] + gh[:, H:2 * H])
        n = jnp.tanh(gx[:, 2 * H:] + r * gh[:, 2 * H:])
        h = (1.0 - z) * n + z * h
        q = jnp.einsum("bh,bha->ba", h, fc2_w) + fc2_b
        qs.append(q)
        hs.append(h)
    return jnp.stack(qs), jnp.stack(hs), jnp.float32(0.0)


# ----- deterministic parameter init -----------------------------------------
def init_params(key):
    ks = jax.random.split(key, 8)
    s = 0.1
    return {
        "wfc1": s * jax.random.normal(ks[0], (INPUT_SHAPE, HIDDEN), F32),
        "bfc1": s * jax.random.normal(ks[1], (1, HIDDEN), F32),
        # GRUCell(HIDDEN -> HIDDEN), gate order [r | z | n]
        "wih": s * jax.random.normal(ks[2], (HIDDEN, 3 * HIDDEN), F32),
        "bih": s * jax.random.normal(ks[3], (1, 3 * HIDDEN), F32),
        "whh": s * jax.random.normal(ks[4], (HIDDEN, 3 * HIDDEN), F32),
        "bhh": s * jax.random.normal(ks[5], (1, 3 * HIDDEN), F32),
        # hyper-nets (no bias)
        "wf2w": s * jax.random.normal(ks[6], (LATENT, HIDDEN * N_ACTIONS), F32),
        "wf2b": s * jax.random.normal(ks[7], (LATENT, N_ACTIONS), F32),
    }


if __name__ == "__main__":
    key = jax.random.PRNGKey(0)
    kp, ki, kh, kl = jax.random.split(key, 4)

    params = init_params(kp)
    inputs_seq = jax.random.normal(ki, (T, BS, N_AGENTS, INPUT_SHAPE), F32)
    hidden0 = jax.random.normal(kh, (BS, N_AGENTS, HIDDEN), F32)
    latent_param = jax.random.uniform(kl, (N_AGENTS, LATENT), F32)   # th.rand analogue

    # Cached once per parameter update (outside the per-rollout jit path).
    packed = pack_weights(params, latent_param)
    row_consts = pack_row_constants(packed, B)

    q_seq, h_seq, loss = jax.block_until_ready(
        rollout_jit(inputs_seq, hidden0, packed, row_consts))

    q_ref, h_ref, _ = ref_rollout(inputs_seq, hidden0, latent_param, params)

    assert q_seq.shape == (T, B, N_ACTIONS) and h_seq.shape == (T, B, HIDDEN)
    assert jnp.allclose(q_seq, q_ref, atol=5e-4, rtol=5e-4), "q mismatch"
    assert jnp.allclose(h_seq, h_ref, atol=5e-4, rtol=5e-4), "h mismatch"
    assert float(loss) == 0.0
    print("KERNEL_OK")
</pallas_src>

<mosaic_0001>
module attributes {stable_mosaic.version = 11 : i64} {
  func.func @gru_step_kernel(%arg0: i32, %arg1: memref<1x8x384xf32, #tpu.memory_space<vmem>>, %arg2: memref<128x640xf32, #tpu.memory_space<vmem>>, %arg3: memref<8x768xf32, #tpu.memory_space<vmem>>, %arg4: memref<1x8x128xf32, #tpu.memory_space<vmem>>, %arg5: memref<8x128xf32, #tpu.memory_space<vmem>>) attributes {dimension_semantics = [#tpu.dimension_semantics<arbitrary>], iteration_bounds = array<i64: 8>, scalar_prefetch = 0 : i64, scratch_operands = 1 : i64, tpu.core_type = #tpu.core_type<tc>, window_params = [{transform_indices = @transform_0, window_bounds = array<i64: 1, 8, 384>}, {pipeline_mode = #tpu.pipeline_mode<synchronous>, transform_indices = @transform_1, window_bounds = array<i64: 128, 640>}, {pipeline_mode = #tpu.pipeline_mode<synchronous>, transform_indices = @transform_2, window_bounds = array<i64: 8, 768>}, {transform_indices = @transform_3, window_bounds = array<i64: 1, 8, 128>}]} {
    %c0_i32 = arith.constant 0 : i32
    %0 = arith.cmpi eq, %arg0, %c0_i32 : i32
    %1 = arith.extui %0 : i1 to i32
    %c0_i32_0 = arith.constant 0 : i32
    %2 = arith.cmpi ne, %1, %c0_i32_0 : i32
    scf.if %2 {
      %c0_23 = arith.constant 0 : index
      %c0_24 = arith.constant 0 : index
      %49 = vector.load %arg3[%c0_23, %c0_24] : memref<8x768xf32, #tpu.memory_space<vmem>>, vector<8x128xf32>
      %c0_25 = arith.constant 0 : index
      %c0_26 = arith.constant 0 : index
      %50 = vector.load %arg5[%c0_25, %c0_26] : memref<8x128xf32, #tpu.memory_space<vmem>>, vector<8x128xf32>
      tpu.vector_store %arg5[%c0_25, %c0_26], %49 {strides = array<i32>} : memref<8x128xf32, #tpu.memory_space<vmem>>, vector<8x128xf32>,
    } else {
    }
    %c0 = arith.constant 0 : index
    %c0_1 = arith.constant 0 : index
    %3 = vector.load %arg5[%c0, %c0_1] : memref<8x128xf32, #tpu.memory_space<vmem>>, vector<8x128xf32>
    %c0_2 = arith.constant 0 : index
    %c0_3 = arith.constant 0 : index
    %c0_4 = arith.constant 0 : index
    %4 = vector.load %arg1[%c0_2, %c0_3, %c0_4] : memref<1x8x384xf32, #tpu.memory_space<vmem>>, vector<1x8x384xf32>
    %5 = vector.shape_cast %4 : vector<1x8x384xf32> to vector<8x384xf32>
    %c0_5 = arith.constant 0 : index
    %c0_6 = arith.constant 0 : index
    %6 = vector.load %arg2[%c0_5, %c0_6] : memref<128x640xf32, #tpu.memory_space<vmem>>, vector<128x384xf32>
    %cst = arith.constant dense<0.000000e+00> : vector<8x384xf32>
    %7 = tpu.matmul %3, %6, %cst {dimension_numbers = #tpu.dot_dimension_numbers<[1], [0], [0], [1], [0, 0, 1, 1], [], []>} : vector<8x128xf32>, vector<128x384xf32>, vector<8x384xf32> -> vector<8x384xf32>
    %c0_7 = arith.constant 0 : index
    %c384 = arith.constant 384 : index
    %8 = vector.load %arg3[%c0_7, %c384] : memref<8x768xf32, #tpu.memory_space<vmem>>, vector<8x384xf32>
    %9 = arith.addf %7, %8 : vector<8x384xf32>
    %10 = vector.extract_strided_slice %5 {offsets = [0, 0], sizes = [8, 128], strides = [1, 1]} : vector<8x384xf32> to vector<8x128xf32>
    %11 = vector.extract_strided_slice %9 {offsets = [0, 0], sizes = [8, 128], strides = [1, 1]} : vector<8x384xf32> to vector<8x128xf32>
    %12 = arith.addf %10, %11 : vector<8x128xf32>
    %13 = arith.negf %12 : vector<8x128xf32>
    %14 = math.exp %13 : vector<8x128xf32>
    %cst_8 = arith.constant 1.000000e+00 : f32
    %15 = vector.broadcast %cst_8 : f32 to vector<8x128xf32>
    %16 = arith.addf %15, %14 : vector<8x128xf32>
    %17 = arith.divf %15, %16 : vector<8x128xf32>
    %18 = vector.extract_strided_slice %5 {offsets = [0, 128], sizes = [8, 128], strides = [1, 1]} : vector<8x384xf32> to vector<8x128xf32>
    %19 = vector.extract_strided_slice %9 {offsets = [0, 128], sizes = [8, 128], strides = [1, 1]} : vector<8x384xf32> to vector<8x128xf32>
    %20 = arith.addf %18, %19 : vector<8x128xf32>
    %21 = arith.negf %20 : vector<8x128xf32>
    %22 = math.exp %21 : vector<8x128xf32>
    %cst_9 = arith.constant 1.000000e+00 : f32
    %23 = vector.broadcast %cst_9 : f32 to vector<8x128xf32>
    %24 = arith.addf %23, %22 : vector<8x128xf32>
    %25 = arith.divf %23, %24 : vector<8x128xf32>
    %26 = vector.extract_strided_slice %5 {offsets = [0, 256], sizes = [8, 128], strides = [1, 1]} : vector<8x384xf32> to vector<8x128xf32>
    %27 = vector.extract_strided_slice %9 {offsets = [0, 256], sizes = [8, 128], strides = [1, 1]} : vector<8x384xf32> to vector<8x128xf32>
    %28 = arith.mulf %17, %27 : vector<8x128xf32>
    %29 = arith.addf %26, %28 : vector<8x128xf32>
    %30 = math.tanh %29 : vector<8x128xf32>
    %cst_10 = arith.constant 1.000000e+00 : f32
    %31 = vector.broadcast %cst_10 : f32 to vector<8x128xf32>
    %32 = arith.subf %31, %25 : vector<8x128xf32>
    %33 = arith.mulf %32, %30 : vector<8x128xf32>
    %34 = arith.mulf %25, %3 : vector<8x128xf32>
    %35 = arith.addf %33, %34 : vector<8x128xf32>
    %c0_11 = arith.constant 0 : index
    %c0_12 = arith.constant 0 : index
    %36 = vector.load %arg5[%c0_11, %c0_12] : memref<8x128xf32, #tpu.memory_space<vmem>>, vector<8x128xf32>
    tpu.vector_store %arg5[%c0_11, %c0_12], %35 {strides = array<i32>} : memref<8x128xf32, #tpu.memory_space<vmem>>, vector<8x128xf32>,
    %c0_13 = arith.constant 0 : index
    %c384_14 = arith.constant 384 : index
    %37 = vector.load %arg2[%c0_13, %c384_14] : memref<128x640xf32, #tpu.memory_space<vmem>>, vector<128x128xf32>
    %cst_15 = arith.constant dense<0.000000e+00> : vector<8x128xf32>
    %38 = tpu.matmul %35, %37, %cst_15 {dimension_numbers = #tpu.dot_dimension_numbers<[1], [0], [0], [1], [0, 0, 1, 1], [], []>} : vector<8x128xf32>, vector<128x128xf32>, vector<8x128xf32> -> vector<8x128xf32>
    %c0_16 = arith.constant 0 : index
    %c128 = arith.constant 128 : index
    %39 = vector.load %arg3[%c0_16, %c128] : memref<8x768xf32, #tpu.memory_space<vmem>>, vector<8x128xf32>
    %40 = arith.mulf %38, %39 : vector<8x128xf32>
    %c0_17 = arith.constant 0 : index
    %c512 = arith.constant 512 : index
    %41 = vector.load %arg2[%c0_17, %c512] : memref<128x640xf32, #tpu.memory_space<vmem>>, vector<128x128xf32>
    %cst_18 = arith.constant dense<0.000000e+00> : vector<8x128xf32>
    %42 = tpu.matmul %40, %41, %cst_18 {dimension_numbers = #tpu.dot_dimension_numbers<[1], [0], [0], [1], [0, 0, 1, 1], [], []>} : vector<8x128xf32>, vector<128x128xf32>, vector<8x128xf32> -> vector<8x128xf32>
    %43 = arith.addf %35, %42 : vector<8x128xf32>
    %c0_19 = arith.constant 0 : index
    %c256 = arith.constant 256 : index
    %44 = vector.load %arg3[%c0_19, %c256] : memref<8x768xf32, #tpu.memory_space<vmem>>, vector<8x128xf32>
    %45 = arith.addf %43, %44 : vector<8x128xf32>
    %c0_20 = arith.constant 0 : index
    %c0_21 = arith.constant 0 : index
    %c0_22 = arith.constant 0 : index
    %46 = vector.load %arg4[%c0_20, %c0_21, %c0_22] : memref<1x8x128xf32, #tpu.memory_space<vmem>>, vector<1x8x128xf32>
    %47 = vector.shape_cast %46 : vector<1x8x128xf32> to vector<8x128xf32>
    %48 = vector.shape_cast %45 : vector<8x128xf32> to vector<1x8x128xf32>
    tpu.vector_store %arg4[%c0_20, %c0_21, %c0_22], %48 {strides = array<i32>} : memref<1x8x128xf32, #tpu.memory_space<vmem>>, vector<1x8x128xf32>,
    return
  }
  func.func @transform_0(%arg0: i32) -> (i32, i32, i32) {
    %c0_i32 = arith.constant 0 : i32
    %c0_i32_0 = arith.constant 0 : i32
    %c0_i32_1 = arith.constant 0 : i32
    return %arg0, %c0_i32, %c0_i32_0 : i32, i32, i32
  }
  func.func @transform_1(%arg0: i32) -> (i32, i32) {
    %c0_i32 = arith.constant 0 : i32
    %c0_i32_0 = arith.constant 0 : i32
    %c0_i32_1 = arith.constant 0 : i32
    return %c0_i32, %c0_i32_0 : i32, i32
  }
  func.func @transform_2(%arg0: i32) -> (i32, i32) {
    %c0_i32 = arith.constant 0 : i32
    %c0_i32_0 = arith.constant 0 : i32
    %c0_i32_1 = arith.constant 0 : i32
    return %c0_i32, %c0_i32_0 : i32, i32
  }
  func.func @transform_3(%arg0: i32) -> (i32, i32, i32) {
    %c0_i32 = arith.constant 0 : i32
    %c0_i32_0 = arith.constant 0 : i32
    %c0_i32_1 = arith.constant 0 : i32
    return %arg0, %c0_i32, %c0_i32_0 : i32, i32, i32
  }
}

</mosaic_0001>

<llo_original>
// kernel: rollout.1
$region0: #{rollout.1}
  #allocation0 [shape = 'u32[]', space=smem, size = 0x4, offset = 0x4, fixed_abs, tag = 'smem constant byte address 0x4 - core index']
  #allocation1 [shape = 'u32[144,128]{1,0:T(1,128)}', space=vmem, size = 0x12000, scoped, tag = 'internal scratch']
  #allocation2 [shape = 'f32[8,128]{1,0:T(8,128)}', space=vmem, size = 0x1000, scoped, tag = 'scratch operand']
  %s0 = inlined_call_operand.vmem [shape: f32[8,8,384], index: 0, kind: input, shape index: {}]
  %s1 = inlined_call_operand.hbm [shape: f32[128,640], index: 1, kind: input, shape index: {}]
  %s2 = inlined_call_operand.vmem [shape: f32[8,768], index: 2, kind: input, shape index: {}]
  %s3 = inlined_call_operand.vmem [shape: f32[8,8,128], index: 3, kind: output, shape index: {}]
  %s4 = sld [smem:[#allocation0]]
  $region53: #{rollout.1} parent=0
    _
  %s6 = ssub.s32 1, %s4
  %s7 = scalar_select 0, %s6, %s4
  $region1: #{rollout.1} parent=0
    #allocation3 [shape = 'u8[327680]{0}', space=vmem, size = 0x50000, scoped, tag = 'input window, operand 1, single buffered']
    #allocation4 [shape = 's32[2]{0}', space=sflag, size = 0x8, scoped, tag = 'scoped memory for rollout.1']
    %8 = vsyncpa [#allocation4], 0
    loop: start=0, step=1, limit=10
    $region2: #{rollout.1} parent=1 // loop_pre_header
      _
    $region3: #{rollout.1} parent=1 // loop_header
      %s10 = sphi 0, %s14
      %p11 = scmp.ge.s32.totalorder %s10, 10
      %s20 = sphi 0, %s22
      %s23 = sphi 0, %s20
      %s24 = sphi 0, %s23
      %s40 = sphi 0, %s24
      %s44 = sphi 0, %s44
      %s46 = sphi 0, %s44
      %s47 = sphi 0, %s46
      %s61 = sphi 0, %s47
      %s65 = sphi 0, %s65
      %s67 = sphi 0, %s65
      %s68 = sphi 0, %s67
      %s82 = sphi 0, %s68
      %s88 = sphi 0, %s90
      %s91 = sphi 0, %s88
      %s92 = sphi 0, %s91
      %s108 = sphi 0, %s92
    $region4: #{rollout.1} parent=1 // loop_header_branch
      %13 = sbr.rel (%p11) target = $region8
    $region5: #{rollout.1} parent=1 // loop_body
      %s15 = ssub.s32 %s10, 1
      %s16 = ssub.s32 %s10, 2
      %s17 = sadd.s32 %s10, 1
      %s18 = ssub.s32 %s10, %s17
      %p19 = scmp.eq.s32.totalorder %s18, 0
      %s21 = sadd.s32 %s20, 1
      %s22 = scalar_select %p19, %s20, %s21
      %p25 = pneg %p19
      %p26 = scmp.eq.s32.totalorder %s10, 7
      %p27 = por %p25, %p26
      %p28 = scmp.ne.s32.totalorder %s20, %s23
      %p29 = scmp.eq.s32.totalorder %s10, 0
      %p30 = por %p28, %p29
      %p31 = scmp.ne.s32.totalorder %s20, %s23
      %p32 = scmp.eq.s32.totalorder %s15, 7
      %p33 = por %p31, %p32
      %p34 = scmp.ne.s32.totalorder %s23, %s24
      %p35 = scmp.eq.s32.totalorder %s15, 0
      %p36 = por %p34, %p35
      %p37 = scmp.ne.s32.totalorder %s23, %s24
      %p38 = scmp.eq.s32.totalorder %s16, 7
      %p39 = por %p37, %p38
      %p41 = scmp.ne.s32.totalorder %s24, %s40
      %p42 = scmp.eq.s32.totalorder %s16, 0
      %p43 = por %p41, %p42
      %s45 = sadd.s32 %s44, 1
      %p48 = scmp.eq.s32.totalorder %s10, 7
      %p49 = scmp.ne.s32.totalorder %s44, %s46
      %p50 = scmp.eq.s32.totalorder %s10, 0
      %p51 = por %p49, %p50
      %p52 = scmp.ne.s32.totalorder %s44, %s46
      %p53 = scmp.eq.s32.totalorder %s15, 7
      %p54 = por %p52, %p53
      %p55 = scmp.ne.s32.totalorder %s46, %s47
      %p56 = scmp.eq.s32.totalorder %s15, 0
      %p57 = por %p55, %p56
      %p58 = scmp.ne.s32.totalorder %s46, %s47
      %p59 = scmp.eq.s32.totalorder %s16, 7
      %p60 = por %p58, %p59
      %p62 = scmp.ne.s32.totalorder %s47, %s61
      %p63 = scmp.eq.s32.totalorder %s16, 0
      %p64 = por %p62, %p63
      %s66 = sadd.s32 %s65, 1
      %p69 = scmp.eq.s32.totalorder %s10, 7
      %p70 = scmp.ne.s32.totalorder %s65, %s67
      %p71 = scmp.eq.s32.totalorder %s10, 0
      %p72 = por %p70, %p71
      %p73 = scmp.ne.s32.totalorder %s65, %s67
      %p74 = scmp.eq.s32.totalorder %s15, 7
      %p75 = por %p73, %p74
      %p76 = scmp.ne.s32.totalorder %s67, %s68
      %p77 = scmp.eq.s32.totalorder %s15, 0
      %p78 = por %p76, %p77
      %p79 = scmp.ne.s32.totalorder %s67, %s68
      %p80 = scmp.eq.s32.totalorder %s16, 7
      %p81 = por %p79, %p80
      %p83 = scmp.ne.s32.totalorder %s68, %s82
      %p84 = scmp.eq.s32.totalorder %s16, 0
      %p85 = por %p83, %p84
      %s86 = ssub.s32 %s10, %s17
      %p87 = scmp.eq.s32.totalorder %s86, 0
      %s89 = sadd.s32 %s88, 1
      %s90 = scalar_select %p87, %s88, %s89
      %p93 = pneg %p87
      %p94 = scmp.eq.s32.totalorder %s10, 7
      %p95 = por %p93, %p94
      %p96 = scmp.ne.s32.totalorder %s88, %s91
      %p97 = scmp.eq.s32.totalorder %s10, 0
      %p98 = por %p96, %p97
      %p99 = scmp.ne.s32.totalorder %s88, %s91
      %p100 = scmp.eq.s32.totalorder %s15, 7
      %p101 = por %p99, %p100
      %p102 = scmp.ne.s32.totalorder %s91, %s92
      %p103 = scmp.eq.s32.totalorder %s15, 0
      %p104 = por %p102, %p103
      %p105 = scmp.ne.s32.totalorder %s91, %s92
      %p106 = scmp.eq.s32.totalorder %s16, 7
      %p107 = por %p105, %p106
      %p109 = scmp.ne.s32.totalorder %s92, %s108
      %p110 = scmp.eq.s32.totalorder %s16, 0
      %p111 = por %p109, %p110
      %p112 = scmp.le.s32.totalorder 1, %s10
      %p113 = scmp.lt.s32.totalorder %s10, 9
      %p114 = pnand %p112, %p113
      %p115 = pneg %p114
      // Predicated region
      $region9: #{rollout.1} parent=5 // pred_check
        _
      $region10: #{rollout.1} parent=5 // pred_check_branch
        %117 = sbr.rel (%p114) target = $region12
      $region11: #{rollout.1} parent=5 // pred_region
        %s118 = ssub.s32 %s10, 1
        // Predicated region
        $region13: #{rollout.1} parent=11 // pred_check
          %p119 = pneg %p57
        $region14: #{rollout.1} parent=11 // pred_check_branch
          %121 = sbr.rel (%p119) target = $region16
        $region15: #{rollout.1} parent=11 // pred_region
          %s123 = ssub.s32 10240, 10240
          %124 = vsyncadd [#allocation4], %s123
          %s125 = sshll.u32 [#allocation3], 4
          %s126 = int_to_ptr.vmem [resolvable:$true] %s125
          %131 = dma.hbm_to_vmem [thread:$0]  %s1, 10240, %s126, [#allocation4], 640, 640, 40
        $region16: #{rollout.1} parent=11 // pred_fallthru
          _
        // Predicated region
        $region17: #{rollout.1} parent=11 // pred_check
          %p132 = pneg %p78
        $region18: #{rollout.1} parent=11 // pred_check_branch
          %134 = sbr.rel (%p132) target = $region20
        $region19: #{rollout.1} parent=11 // pred_region
          _
        $region20: #{rollout.1} parent=11 // pred_fallthru
          _
      $region12: #{rollout.1} parent=5 // pred_fallthru
        _
      %p135 = scmp.lt.s32.totalorder %s10, 8
      // Predicated region
      $region21: #{rollout.1} parent=5 // pred_check
        %p136 = pneg %p135
      $region22: #{rollout.1} parent=5 // pred_check_branch
        %138 = sbr.rel (%p136) target = $region24
      $region23: #{rollout.1} parent=5 // pred_region
        // Predicated region
        $region25: #{rollout.1} parent=23 // pred_check
          %p139 = pneg %p30
        $region26: #{rollout.1} parent=23 // pred_check_branch
          %141 = sbr.rel (%p139) target = $region28
        $region27: #{rollout.1} parent=23 // pred_region
          %p142 = scmp.lt.s32.totalorder %s10, 7
          %s143 = scalar_select %p142, %s10, 7
          %s144 = smul.addr %s143, 3
          %s145 = smul.addr %s144, 8
          %s146 = scalar_lea.vmem %s0, %s145
        $region28: #{rollout.1} parent=23 // pred_fallthru
          _
      $region24: #{rollout.1} parent=5 // pred_fallthru
        _
      %p147 = scmp.le.s32.totalorder 1, %s10
      %p148 = scmp.lt.s32.totalorder %s10, 9
      %p149 = pnand %p147, %p148
      %p150 = pneg %p149
      // Predicated region
      $region29: #{rollout.1} parent=5 // pred_check
        _
      $region30: #{rollout.1} parent=5 // pred_check_branch
        %152 = sbr.rel (%p149) target = $region32
      $region31: #{rollout.1} parent=5 // pred_region
        %s153 = ssub.s32 %s10, 1
        // Predicated region
        $region33: #{rollout.1} parent=31 // pred_check
          %p154 = pneg %p57
        $region34: #{rollout.1} parent=31 // pred_check_branch
          %156 = sbr.rel (%p154) target = $region36
        $region35: #{rollout.1} parent=31 // pred_region
          %157 = dma.done [#allocation4], 10240
        $region36: #{rollout.1} parent=31 // pred_fallthru
          _
        %p158 = scmp.lt.s32.totalorder %s15, 7
        %s159 = scalar_select %p158, %s15, 7
        %s160 = smul.addr %s159, 3
        %s161 = smul.addr %s160, 8
        %s162 = scalar_lea.vmem %s0, %s161
        %p163 = pneg %p36
        %p164 = pneg %p33
        %p165 = pneg %p57
        %p166 = pneg %p54
        %p167 = pneg %p78
        %p168 = pneg %p75
        %p169 = pneg %p104
        %p170 = pneg %p101
        %p171 = scmp.lt.s32.totalorder %s15, 7
        %s172 = scalar_select %p171, %s15, 7
        %s173 = smul.addr %s172, 8
        %s174 = scalar_lea.vmem %s3, %s173
        %p175 = scmp.lt.s32.totalorder %s15, 7
        %s176 = scalar_select %p175, %s15, 7
        %s177 = smul.addr %s176, 3
        %s178 = smul.addr %s177, 8
        %s179 = scalar_lea.vmem %s0, %s178
        %p180 = scmp.lt.s32.totalorder %s15, 7
        %s181 = scalar_select %p180, %s15, 7
        %s182 = smul.addr %s181, 8
        %s183 = scalar_lea.vmem %s3, %s182
        %p184 = scmp.eq.s32.totalorder %s15, 0
        // Predicated region
        $region37: #{rollout.1} parent=31 // pred_check
          %p185 = pneg %p184
        $region38: #{rollout.1} parent=31 // pred_check_branch
          %187 = sbr.rel (%p185) target = $region40
        $region39: #{rollout.1} parent=31 // pred_region
          %v188 = vld [vmem:[%s2] sm:$0xff]
          %189 = vst [vmem:[#allocation2] sm:$0xff] %v188
        $region40: #{rollout.1} parent=31 // pred_fallthru
          _
        %v190 = vld [vmem:[#allocation2] sm:$0xff]
        %v191 = vld [vmem:[%s179] sm:$0xff]
        %v192 = vld [vmem:[%s179 + $0x8] sm:$0xff]
        %v193 = vld [vmem:[%s179 + $0x10] sm:$0xff]
        %v194 = vld [vmem:[#allocation3] sm:$0xff]
        %v195 = vld [vmem:[#allocation3 + $0x8] sm:$0xff]
        %v196 = vld [vmem:[#allocation3 + $0x10] sm:$0xff]
        %v197 = vld [vmem:[#allocation3 + $0x28] sm:$0xff]
        %v198 = vld [vmem:[#allocation3 + $0x30] sm:$0xff]
        %v199 = vld [vmem:[#allocation3 + $0x38] sm:$0xff]
        %v200 = vld [vmem:[#allocation3 + $0x50] sm:$0xff]
        %v201 = vld [vmem:[#allocation3 + $0x58] sm:$0xff]
        %v202 = vld [vmem:[#allocation3 + $0x60] sm:$0xff]
        %v203 = vld [vmem:[#allocation3 + $0x78] sm:$0xff]
        %v204 = vld [vmem:[#allocation3 + $0x80] sm:$0xff]
        %v205 = vld [vmem:[#allocation3 + $0x88] sm:$0xff]
        %v206 = vld [vmem:[#allocation3 + $0xa0] sm:$0xff]
        %v207 = vld [vmem:[#allocation3 + $0xa8] sm:$0xff]
        %v208 = vld [vmem:[#allocation3 + $0xb0] sm:$0xff]
        %v209 = vld [vmem:[#allocation3 + $0xc8] sm:$0xff]
        %v210 = vld [vmem:[#allocation3 + $0xd0] sm:$0xff]
        %v211 = vld [vmem:[#allocation3 + $0xd8] sm:$0xff]
        %v212 = vld [vmem:[#allocation3 + $0xf0] sm:$0xff]
        %v213 = vld [vmem:[#allocation3 + $0xf8] sm:$0xff]
        %v214 = vld [vmem:[#allocation3 + $0x100] sm:$0xff]
        %v215 = vld [vmem:[#allocation3 + $0x118] sm:$0xff]
        %v216 = vld [vmem:[#allocation3 + $0x120] sm:$0xff]
        %v217 = vld [vmem:[#allocation3 + $0x128] sm:$0xff]
        %v218 = vld [vmem:[#allocation3 + $0x140] sm:$0xff]
        %v219 = vld [vmem:[#allocation3 + $0x148] sm:$0xff]
        %v220 = vld [vmem:[#allocation3 + $0x150] sm:$0xff]
        %v221 = vld [vmem:[#allocation3 + $0x168] sm:$0xff]
        %v222 = vld [vmem:[#allocation3 + $0x170] sm:$0xff]
        %v223 = vld [vmem:[#allocation3 + $0x178] sm:$0xff]
        %v224 = vld [vmem:[#allocation3 + $0x190] sm:$0xff]
        %v225 = vld [vmem:[#allocation3 + $0x198] sm:$0xff]
        %v226 = vld [vmem:[#allocation3 + $0x1a0] sm:$0xff]
        %v227 = vld [vmem:[#allocation3 + $0x1b8] sm:$0xff]
        %v228 = vld [vmem:[#allocation3 + $0x1c0] sm:$0xff]
        %v229 = vld [vmem:[#allocation3 + $0x1c8] sm:$0xff]
        %v230 = vld [vmem:[#allocation3 + $0x1e0] sm:$0xff]
        %v231 = vld [vmem:[#allocation3 + $0x1e8] sm:$0xff]
        %v232 = vld [vmem:[#allocation3 + $0x1f0] sm:$0xff]
        %v233 = vld [vmem:[#allocation3 + $0x208] sm:$0xff]
        %v234 = vld [vmem:[#allocation3 + $0x210] sm:$0xff]
        %v235 = vld [vmem:[#allocation3 + $0x218] sm:$0xff]
        %v236 = vld [vmem:[#allocation3 + $0x230] sm:$0xff]
        %v237 = vld [vmem:[#allocation3 + $0x238] sm:$0xff]
        %v238 = vld [vmem:[#allocation3 + $0x240] sm:$0xff]
        %v239 = vld [vmem:[#allocation3 + $0x258] sm:$0xff]
        %v240 = vld [vmem:[#allocation3 + $0x260] sm:$0xff]
        %v241 = vld [vmem:[#allocation3 + $0x268] sm:$0xff]
        %v242 = vld [vmem:[%s2 + $0x18] sm:$0xff]
        %v243 = vld [vmem:[%s2 + $0x20] sm:$0xff]
        %v244 = vld [vmem:[%s2 + $0x28] sm:$0xff]
        %245 = vmatprep.subr.mxu0 %v195
        %246 = vmatpush1.msra.mxu0 %v194
        %247 = vmatprep.subr.mxu0 %v198
        %248 = vmatpush1.msra.mxu0 %v197
        %249 = vmatprep.subr.mxu0 %v201
        %250 = vmatpush1.msra.mxu0 %v200
        %251 = vmatprep.subr.mxu0 %v204
        %252 = vmatpush1.msra.mxu0 %v203
        %253 = vmatprep.subr.mxu0 %v207
        %254 = vmatpush1.msra.mxu0 %v206
        %255 = vmatprep.subr.mxu0 %v210
        %256 = vmatpush1.msra.mxu0 %v209
        %257 = vmatprep.subr.mxu0 %v213
        %258 = vmatpush1.msra.mxu0 %v212
        %259 = vmatprep.subr.mxu0 %v216
        %260 = vmatpush1.msra.mxu0 %v215
        %261 = vmatprep.subr.mxu0 %v219
        %262 = vmatpush1.msra.mxu0 %v218
        %263 = vmatprep.subr.mxu0 %v222
        %264 = vmatpush1.msra.mxu0 %v221
        %265 = vmatprep.subr.mxu0 %v225
        %266 = vmatpush1.msra.mxu0 %v224
        %267 = vmatprep.subr.mxu0 %v228
        %268 = vmatpush1.msra.mxu0 %v227
        %269 = vmatprep.subr.mxu0 %v231
        %270 = vmatpush1.msra.mxu0 %v230
        %271 = vmatprep.subr.mxu0 %v234
        %272 = vmatpush1.msra.mxu0 %v233
        %273 = vmatprep.subr.mxu0 %v237
        %274 = vmatpush1.msra.mxu0 %v236
        %275 = vmatprep.subr.mxu0 %v240
        %276 = vmatpush1.msra.mxu0 %v239
        %277 = vmatprep.subr.mxu0 0.0
        %278 = vmatpush1.msra.mxu0 0.0
        %279 = vmatprep.subr.mxu0 0.0
        %280 = vmatpush1.msra.mxu0 0.0
        %281 = vmatprep.subr.mxu0 0.0
        %282 = vmatpush1.msra.mxu0 0.0
        %283 = vmatprep.subr.mxu0 0.0
        %284 = vmatpush1.msra.mxu0 0.0
        %285 = vmatprep.subr.mxu0 0.0
        %286 = vmatpush1.msra.mxu0 0.0
        %287 = vmatprep.subr.mxu0 0.0
        %288 = vmatpush1.msra.mxu0 0.0
        %289 = vmatprep.subr.mxu0 0.0
        %290 = vmatpush1.msra.mxu0 0.0
        %291 = vmatprep.subr.mxu0 0.0
        %292 = vmatpush1.msra.mxu0 0.0
        %293 = vmatprep.subr.mxu0 0.0
        %294 = vmatpush1.msra.mxu0 0.0
        %295 = vmatprep.subr.mxu0 0.0
        %296 = vmatpush1.msra.mxu0 0.0
        %297 = vmatprep.subr.mxu0 0.0
        %298 = vmatpush1.msra.mxu0 0.0
        %299 = vmatprep.subr.mxu0 0.0
        %300 = vmatpush1.msra.mxu0 0.0
        %301 = vmatprep.subr.mxu0 0.0
        %302 = vmatpush1.msra.mxu0 0.0
        %303 = vmatprep.subr.mxu0 0.0
        %304 = vmatpush1.msra.mxu0 0.0
        %305 = vmatprep.subr.mxu0 0.0
        %306 = vmatpush1.msra.mxu0 0.0
        %307 = vmatprep.subr.mxu0 0.0
        %308 = vmatpush1.msra.mxu0 0.0
        %309 = vmatprep.mubr.f32.mxu0 0.0
        %310 = vmatmul.mubr.f32.gmra.mrb[0].mxu0 %v190
        %v311 = vpop.f32.mrb[0].mxu0
        %v312 = vadd.f32 %v242, %v311
        %v313 = vpop.f32.mrb[0].mxu0
        %v314 = vadd.f32 %v243, %v313
        %315 = vdwg.mxu0
        %316 = vmatprep.subr.mxu0 0.0
        %317 = vmatpush1.msra.mxu0 %v196
        %318 = vmatprep.subr.mxu0 0.0
        %319 = vmatpush1.msra.mxu0 %v199
        %320 = vmatprep.subr.mxu0 0.0
        %321 = vmatpush1.msra.mxu0 %v202
        %322 = vmatprep.subr.mxu0 0.0
        %323 = vmatpush1.msra.mxu0 %v205
        %324 = vmatprep.subr.mxu0 0.0
        %325 = vmatpush1.msra.mxu0 %v208
        %326 = vmatprep.subr.mxu0 0.0
        %327 = vmatpush1.msra.mxu0 %v211
        %328 = vmatprep.subr.mxu0 0.0
        %329 = vmatpush1.msra.mxu0 %v214
        %330 = vmatprep.subr.mxu0 0.0
        %331 = vmatpush1.msra.mxu0 %v217
        %332 = vmatprep.subr.mxu0 0.0
        %333 = vmatpush1.msra.mxu0 %v220
        %334 = vmatprep.subr.mxu0 0.0
        %335 = vmatpush1.msra.mxu0 %v223
        %336 = vmatprep.subr.mxu0 0.0
        %337 = vmatpush1.msra.mxu0 %v226
        %338 = vmatprep.subr.mxu0 0.0
        %339 = vmatpush1.msra.mxu0 %v229
        %340 = vmatprep.subr.mxu0 0.0
        %341 = vmatpush1.msra.mxu0 %v232
        %342 = vmatprep.subr.mxu0 0.0
        %343 = vmatpush1.msra.mxu0 %v235
        %344 = vmatprep.subr.mxu0 0.0
        %345 = vmatpush1.msra.mxu0 %v238
        %346 = vmatprep.subr.mxu0 0.0
        %347 = vmatpush1.msra.mxu0 %v241
        %348 = vmatprep.subr.mxu0 0.0
        %349 = vmatpush1.msra.mxu0 0.0
        %350 = vmatprep.subr.mxu0 0.0
        %351 = vmatpush1.msra.mxu0 0.0
        %352 = vmatprep.subr.mxu0 0.0
        %353 = vmatpush1.msra.mxu0 0.0
        %354 = vmatprep.subr.mxu0 0.0
        %355 = vmatpush1.msra.mxu0 0.0
        %356 = vmatprep.subr.mxu0 0.0
        %357 = vmatpush1.msra.mxu0 0.0
        %358 = vmatprep.subr.mxu0 0.0
        %359 = vmatpush1.msra.mxu0 0.0
        %360 = vmatprep.subr.mxu0 0.0
        %361 = vmatpush1.msra.mxu0 0.0
        %362 = vmatprep.subr.mxu0 0.0
        %363 = vmatpush1.msra.mxu0 0.0
        %364 = vmatprep.subr.mxu0 0.0
        %365 = vmatpush1.msra.mxu0 0.0
        %366 = vmatprep.subr.mxu0 0.0
        %367 = vmatpush1.msra.mxu0 0.0
        %368 = vmatprep.subr.mxu0 0.0
        %369 = vmatpush1.msra.mxu0 0.0
        %370 = vmatprep.subr.mxu0 0.0
        %371 = vmatpush1.msra.mxu0 0.0
        %372 = vmatprep.subr.mxu0 0.0
        %373 = vmatpush1.msra.mxu0 0.0
        %374 = vmatprep.subr.mxu0 0.0
        %375 = vmatpush1.msra.mxu0 0.0
        %376 = vmatprep.subr.mxu0 0.0
        %377 = vmatpush1.msra.mxu0 0.0
        %378 = vmatprep.subr.mxu0 0.0
        %379 = vmatpush1.msra.mxu0 0.0
        %380 = vmatprep.mubr.f32.mxu0 0.0
        %381 = vmatmul.mubr.f32.gmra.mrb[0].mxu0 %v190
        %v382 = vpop.f32.mrb[0].mxu0
        %v383 = vadd.f32 %v244, %v382
        %v384 = vpop.f32.mrb[0].mxu0
        %385 = vdwg.mxu0
        %v386 = vadd.f32 %v191, %v312
        %v387 = vxor.u32 %v386, 2147483648
        %v388 = vmul.f32 %v387, 1.442695
        %v389 = vpow.pop %v388
        %v390 = vadd.f32 %v389, 1.0
        %v391 = vrcp.pop %v390
        %v392 = vmul.f32 1.0, %v391
        %v393 = vadd.f32 %v192, %v314
        %v394 = vxor.u32 %v393, 2147483648
        %v395 = vmul.f32 %v394, 1.442695
        %v396 = vpow.pop %v395
        %v397 = vadd.f32 %v396, 1.0
        %v398 = vrcp.pop %v397
        %v399 = vmul.f32 1.0, %v398
        %v400 = vmul.f32 %v392, %v383
        %v401 = vadd.f32 %v193, %v400
        %v402 = vtanh.pop %v401
        %v403 = vsub.f32 1.0, %v399
        %v404 = vmul.f32 %v403, %v402
        %v405 = vmul.f32 %v399, %v190
        %v406 = vadd.f32 %v404, %v405
        %407 = vst [vmem:[#allocation2] sm:$0xff] %v406
        %v408 = vld [vmem:[#allocation3 + $0x18] sm:$0xff]
        %v409 = vld [vmem:[#allocation3 + $0x40] sm:$0xff]
        %v410 = vld [vmem:[#allocation3 + $0x68] sm:$0xff]
        %v411 = vld [vmem:[#allocation3 + $0x90] sm:$0xff]
        %v412 = vld [vmem:[#allocation3 + $0xb8] sm:$0xff]
        %v413 = vld [vmem:[#allocation3 + $0xe0] sm:$0xff]
        %v414 = vld [vmem:[#allocation3 + $0x108] sm:$0xff]
        %v415 = vld [vmem:[#allocation3 + $0x130] sm:$0xff]
        %v416 = vld [vmem:[#allocation3 + $0x158] sm:$0xff]
        %v417 = vld [vmem:[#allocation3 + $0x180] sm:$0xff]
        %v418 = vld [vmem:[#allocation3 + $0x1a8] sm:$0xff]
        %v419 = vld [vmem:[#allocation3 + $0x1d0] sm:$0xff]
        %v420 = vld [vmem:[#allocation3 + $0x1f8] sm:$0xff]
        %v421 = vld [vmem:[#allocation3 + $0x220] sm:$0xff]
        %v422 = vld [vmem:[#allocation3 + $0x248] sm:$0xff]
        %v423 = vld [vmem:[#allocation3 + $0x270] sm:$0xff]
        %424 = vmatprep.subr.mxu0 0.0
        %425 = vmatpush1.msra.mxu0 %v408
        %426 = vmatprep.subr.mxu0 0.0
        %427 = vmatpush1.msra.mxu0 %v409
        %428 = vmatprep.subr.mxu0 0.0
        %429 = vmatpush1.msra.mxu0 %v410
        %430 = vmatprep.subr.mxu0 0.0
        %431 = vmatpush1.msra.mxu0 %v411
        %432 = vmatprep.subr.mxu0 0.0
        %433 = vmatpush1.msra.mxu0 %v412
        %434 = vmatprep.subr.mxu0 0.0
        %435 = vmatpush1.msra.mxu0 %v413
        %436 = vmatprep.subr.mxu0 0.0
        %437 = vmatpush1.msra.mxu0 %v414
        %438 = vmatprep.subr.mxu0 0.0
        %439 = vmatpush1.msra.mxu0 %v415
        %440 = vmatprep.subr.mxu0 0.0
        %441 = vmatpush1.msra.mxu0 %v416
        %442 = vmatprep.subr.mxu0 0.0
        %443 = vmatpush1.msra.mxu0 %v417
        %444 = vmatprep.subr.mxu0 0.0
        %445 = vmatpush1.msra.mxu0 %v418
        %446 = vmatprep.subr.mxu0 0.0
        %447 = vmatpush1.msra.mxu0 %v419
        %448 = vmatprep.subr.mxu0 0.0
        %449 = vmatpush1.msra.mxu0 %v420
        %450 = vmatprep.subr.mxu0 0.0
        %451 = vmatpush1.msra.mxu0 %v421
        %452 = vmatprep.subr.mxu0 0.0
        %453 = vmatpush1.msra.mxu0 %v422
        %454 = vmatprep.subr.mxu0 0.0
        %455 = vmatpush1.msra.mxu0 %v423
        %456 = vmatprep.subr.mxu0 0.0
        %457 = vmatpush1.msra.mxu0 0.0
        %458 = vmatprep.subr.mxu0 0.0
        %459 = vmatpush1.msra.mxu0 0.0
        %460 = vmatprep.subr.mxu0 0.0
        %461 = vmatpush1.msra.mxu0 0.0
        %462 = vmatprep.subr.mxu0 0.0
        %463 = vmatpush1.msra.mxu0 0.0
        %464 = vmatprep.subr.mxu0 0.0
        %465 = vmatpush1.msra.mxu0 0.0
        %466 = vmatprep.subr.mxu0 0.0
        %467 = vmatpush1.msra.mxu0 0.0
        %468 = vmatprep.subr.mxu0 0.0
        %469 = vmatpush1.msra.mxu0 0.0
        %470 = vmatprep.subr.mxu0 0.0
        %471 = vmatpush1.msra.mxu0 0.0
        %472 = vmatprep.subr.mxu0 0.0
        %473 = vmatpush1.msra.mxu0 0.0
        %474 = vmatprep.subr.mxu0 0.0
        %475 = vmatpush1.msra.mxu0 0.0
        %476 = vmatprep.subr.mxu0 0.0
        %477 = vmatpush1.msra.mxu0 0.0
        %478 = vmatprep.subr.mxu0 0.0
        %479 = vmatpush1.msra.mxu0 0.0
        %480 = vmatprep.subr.mxu0 0.0
        %481 = vmatpush1.msra.mxu0 0.0
        %482 = vmatprep.subr.mxu0 0.0
        %483 = vmatpush1.msra.mxu0 0.0
        %484 = vmatprep.subr.mxu0 0.0
        %485 = vmatpush1.msra.mxu0 0.0
        %486 = vmatprep.subr.mxu0 0.0
        %487 = vmatpush1.msra.mxu0 0.0
        %488 = vmatprep.mubr.f32.mxu0 0.0
        %489 = vmatmul.mubr.f32.gmra.mrb[0].mxu0 %v406
        %v490 = vpop.f32.mrb[0].mxu0
        %v491 = vadd.f32 0.0, %v490
        %v492 = vpop.f32.mrb[0].mxu0
        %493 = vdwg.mxu0
        %v494 = vld [vmem:[%s2 + $0x8] sm:$0xff]
        %v495 = vmul.f32 %v491, %v494
        %v496 = vld [vmem:[#allocation3 + $0x20] sm:$0xff]
        %v497 = vld [vmem:[#allocation3 + $0x48] sm:$0xff]
        %v498 = vld [vmem:[#allocation3 + $0x70] sm:$0xff]
        %v499 = vld [vmem:[#allocation3 + $0x98] sm:$0xff]
        %v500 = vld [vmem:[#allocation3 + $0xc0] sm:$0xff]
        %v501 = vld [vmem:[#allocation3 + $0xe8] sm:$0xff]
        %v502 = vld [vmem:[#allocation3 + $0x110] sm:$0xff]
        %v503 = vld [vmem:[#allocation3 + $0x138] sm:$0xff]
        %v504 = vld [vmem:[#allocation3 + $0x160] sm:$0xff]
        %v505 = vld [vmem:[#allocation3 + $0x188] sm:$0xff]
        %v506 = vld [vmem:[#allocation3 + $0x1b0] sm:$0xff]
        %v507 = vld [vmem:[#allocation3 + $0x1d8] sm:$0xff]
        %v508 = vld [vmem:[#allocation3 + $0x200] sm:$0xff]
        %v509 = vld [vmem:[#allocation3 + $0x228] sm:$0xff]
        %v510 = vld [vmem:[#allocation3 + $0x250] sm:$0xff]
        %v511 = vld [vmem:[#allocation3 + $0x278] sm:$0xff]
        %512 = vmatprep.subr.mxu0 0.0
        %513 = vmatpush1.msra.mxu0 %v496
        %514 = vmatprep.subr.mxu0 0.0
        %515 = vmatpush1.msra.mxu0 %v497
        %516 = vmatprep.subr.mxu0 0.0
        %517 = vmatpush1.msra.mxu0 %v498
        %518 = vmatprep.subr.mxu0 0.0
        %519 = vmatpush1.msra.mxu0 %v499
        %520 = vmatprep.subr.mxu0 0.0
        %521 = vmatpush1.msra.mxu0 %v500
        %522 = vmatprep.subr.mxu0 0.0
        %523 = vmatpush1.msra.mxu0 %v501
        %524 = vmatprep.subr.mxu0 0.0
        %525 = vmatpush1.msra.mxu0 %v502
        %526 = vmatprep.subr.mxu0 0.0
        %527 = vmatpush1.msra.mxu0 %v503
        %528 = vmatprep.subr.mxu0 0.0
        %529 = vmatpush1.msra.mxu0 %v504
        %530 = vmatprep.subr.mxu0 0.0
        %531 = vmatpush1.msra.mxu0 %v505
        %532 = vmatprep.subr.mxu0 0.0
        %533 = vmatpush1.msra.mxu0 %v506
        %534 = vmatprep.subr.mxu0 0.0
        %535 = vmatpush1.msra.mxu0 %v507
        %536 = vmatprep.subr.mxu0 0.0
        %537 = vmatpush1.msra.mxu0 %v508
        %538 = vmatprep.subr.mxu0 0.0
        %539 = vmatpush1.msra.mxu0 %v509
        %540 = vmatprep.subr.mxu0 0.0
        %541 = vmatpush1.msra.mxu0 %v510
        %542 = vmatprep.subr.mxu0 0.0
        %543 = vmatpush1.msra.mxu0 %v511
        %544 = vmatprep.subr.mxu0 0.0
        %545 = vmatpush1.msra.mxu0 0.0
        %546 = vmatprep.subr.mxu0 0.0
        %547 = vmatpush1.msra.mxu0 0.0
        %548 = vmatprep.subr.mxu0 0.0
        %549 = vmatpush1.msra.mxu0 0.0
        %550 = vmatprep.subr.mxu0 0.0
        %551 = vmatpush1.msra.mxu0 0.0
        %552 = vmatprep.subr.mxu0 0.0
        %553 = vmatpush1.msra.mxu0 0.0
        %554 = vmatprep.subr.mxu0 0.0
        %555 = vmatpush1.msra.mxu0 0.0
        %556 = vmatprep.subr.mxu0 0.0
        %557 = vmatpush1.msra.mxu0 0.0
        %558 = vmatprep.subr.mxu0 0.0
        %559 = vmatpush1.msra.mxu0 0.0
        %560 = vmatprep.subr.mxu0 0.0
        %561 = vmatpush1.msra.mxu0 0.0
        %562 = vmatprep.subr.mxu0 0.0
        %563 = vmatpush1.msra.mxu0 0.0
        %564 = vmatprep.subr.mxu0 0.0
        %565 = vmatpush1.msra.mxu0 0.0
        %566 = vmatprep.subr.mxu0 0.0
        %567 = vmatpush1.msra.mxu0 0.0
        %568 = vmatprep.subr.mxu0 0.0
        %569 = vmatpush1.msra.mxu0 0.0
        %570 = vmatprep.subr.mxu0 0.0
        %571 = vmatpush1.msra.mxu0 0.0
        %572 = vmatprep.subr.mxu0 0.0
        %573 = vmatpush1.msra.mxu0 0.0
        %574 = vmatprep.subr.mxu0 0.0
        %575 = vmatpush1.msra.mxu0 0.0
        %576 = vmatprep.mubr.f32.mxu0 0.0
        %577 = vmatmul.mubr.f32.gmra.mrb[0].mxu0 %v495
        %v578 = vpop.f32.mrb[0].mxu0
        %v579 = vadd.f32 0.0, %v578
        %v580 = vpop.f32.mrb[0].mxu0
        %581 = vdwg.mxu0
        %v582 = vadd.f32 %v406, %v579
        %v583 = vld [vmem:[%s2 + $0x10] sm:$0xff]
        %v584 = vadd.f32 %v582, %v583
        %585 = vst [vmem:[%s183] sm:$0xff] %v584
        %p586 = scmp.lt.s32.totalorder %s15, 7
        %s587 = scalar_select %p586, %s15, 7
        %s588 = smul.addr %s587, 8
        %s589 = scalar_lea.vmem %s3, %s588
        // Predicated region
        $region41: #{rollout.1} parent=31 // pred_check
          %p590 = pneg %p101
        $region42: #{rollout.1} parent=31 // pred_check_branch
          %592 = sbr.rel (%p590) target = $region44
        $region43: #{rollout.1} parent=31 // pred_region
          _
        $region44: #{rollout.1} parent=31 // pred_fallthru
          _
      $region32: #{rollout.1} parent=5 // pred_fallthru
        _
      %p593 = scmp.le.s32.totalorder 2, %s10
      // Predicated region
      $region45: #{rollout.1} parent=5 // pred_check
        %p594 = pneg %p593
      $region46: #{rollout.1} parent=5 // pred_check_branch
        %596 = sbr.rel (%p594) target = $region48
      $region47: #{rollout.1} parent=5 // pred_region
        %s597 = ssub.s32 %s10, 2
        // Predicated region
        $region49: #{rollout.1} parent=47 // pred_check
          %p598 = pneg %p107
        $region50: #{rollout.1} parent=47 // pred_check_branch
          %600 = sbr.rel (%p598) target = $region52
        $region51: #{rollout.1} parent=47 // pred_region
          %p601 = scmp.lt.s32.totalorder %s16, 7
          %s602 = scalar_select %p601, %s16, 7
          %s603 = smul.addr %s602, 8
          %s604 = scalar_lea.vmem %s3, %s603
        $region52: #{rollout.1} parent=47 // pred_fallthru
          _
      $region48: #{rollout.1} parent=5 // pred_fallthru
        _
    $region6: #{rollout.1} parent=1 // loop_footer
      %s14 = sadd.s32 1, %s10
    $region7: #{rollout.1} parent=1 // loop_footer_branch
      %9 = sbr.rel target = $region3
    $region8: #{rollout.1} parent=1 // loop_exit
      _
    %605 = vsyncpa [#allocation4], 1
    %s606 = scalar_lea.sflag [#allocation4], 1
    %607 = vsyncpa %s606, 1

</llo_original>
